<compile_context>
chip_gen: v5e
topology: v5e:2x2
jax: 0.10.0
libtpu: 0.0.40
codegen_flags: <defaults>
</compile_context>

<pallas_src>
import jax
import jax.numpy as jnp
from jax import lax
from jax.experimental import pallas as pl
from jax.experimental.pallas import tpu as pltpu


def _mask_kernel(w_ref, b_ref, x_ref, o_ref):
    # w_ref: (tf, H)     compute dtype
    # b_ref: (tf, 1)     float32
    # x_ref: (1, tt, H)  compute dtype
    # o_ref: (1, tf, tt) output dtype  (frame axis is the lane-dense minor dim)
    w = w_ref[...]
    x = x_ref[0]
    # Contract the hidden dim of both operands -> (tf, tt). The MXU consumes
    # the transposed RHS directly; no in-kernel transpose is materialized.
    z = lax.dot_general(
        w, x,
        dimension_numbers=(((1,), (1,)), ((), ())),
        preferred_element_type=jnp.float32,
    )
    z = z + b_ref[...]                               # (tf, 1) broadcast over lanes
    # Sigmoid on the f32 accumulator (exp/tanh hit the otherwise-idle EUP slot),
    # cast only at the store.
    o_ref[0] = jax.nn.sigmoid(z).astype(o_ref.dtype)


def _pick_tile(dim, pref, align):
    """Full dim if small enough, else the largest `align`-multiple <= pref."""
    if dim <= pref:
        return dim
    return max((pref // align) * align, align)


def mask_forward(data, weight, bias, n_bins, n_channels, *,
                 tile_f=256, tile_t=256, compute_dtype=jnp.bfloat16):
    """Forward pass of `Mask`.

    data:   (B, T, H) activations
    weight: (F, H)    PyTorch nn.Linear weight, F = n_bins * n_channels
    bias:   (F,)
    Returns (B, n_channels, n_bins, T) in data.dtype.
    """
    B, T, H = data.shape
    F = n_bins * n_channels
    assert weight.shape == (F, H) and bias.shape == (F,)
    out_dtype = data.dtype

    # Pre-permute the F rows (bins-major/channels-minor -> channels-major) so
    # the kernel writes the final (B, n_channels*n_bins, T) layout directly and
    # the post-kernel step is a pure (free) reshape, not a transpose.
    w_perm = weight.reshape(n_bins, n_channels, H).transpose(1, 0, 2).reshape(F, H)
    b_perm = bias.reshape(n_bins, n_channels).T.reshape(F, 1).astype(jnp.float32)

    x_c = data.astype(compute_dtype)
    w_c = w_perm.astype(compute_dtype)

    tf = _pick_tile(F, tile_f, 8)      # sublane dim of the output tile
    tt = _pick_tile(T, tile_t, 128)    # lane dim of the output tile (lane-dense)
    grid = (B, pl.cdiv(F, tf), pl.cdiv(T, tt))

    in_item = jnp.dtype(compute_dtype).itemsize
    out_item = jnp.dtype(out_dtype).itemsize
    cost = pl.CostEstimate(
        flops=2 * B * T * H * F,
        transcendentals=B * T * F,
        bytes_accessed=(B * T * H * in_item     # activations
                        + F * H * in_item       # weight
                        + F * 4                 # bias
                        + B * F * T * out_item  # output
                        ),
    )

    out = pl.pallas_call(
        _mask_kernel,
        out_shape=jax.ShapeDtypeStruct((B, F, T), out_dtype),
        grid_spec=pltpu.PrefetchScalarGridSpec(
            num_scalar_prefetch=0,
            grid=grid,
            in_specs=[
                # Weight/bias tiles: index constant across the innermost
                # (frame-tile) axis => DMA'd once, stays resident in VMEM.
                pl.BlockSpec((tf, H), lambda b, fi, ti: (fi, 0)),
                pl.BlockSpec((tf, 1), lambda b, fi, ti: (fi, 0)),
                pl.BlockSpec((1, tt, H), lambda b, fi, ti: (b, ti, 0)),
            ],
            out_specs=pl.BlockSpec((1, tf, tt), lambda b, fi, ti: (b, fi, ti)),
        ),
        compiler_params=pltpu.CompilerParams(
            # All grid axes are independent -> megacore can shard any of them
            # (important for v7x's 2 TensorCores); small per-step tiles keep the
            # double-buffered VMEM footprint well under the v5e/v7x budgets.
            dimension_semantics=("parallel", "parallel", "parallel"),
        ),
        cost_estimate=cost,
    )(w_c, b_perm, x_c)

    # Pure reshape: rows are already ordered (channel-major, bin-minor).
    return out.reshape(B, n_channels, n_bins, T)


if __name__ == "__main__":
    # Small shapes consistent with the module.
    n_batch, n_frames = 2, 256
    hidden_size = 32
    n_bins, n_channels = 16, 2
    F = n_bins * n_channels

    key = jax.random.PRNGKey(0)
    k_x, k_w, k_b = jax.random.split(key, 3)

    x = jax.random.normal(k_x, (n_batch, n_frames, hidden_size), jnp.float32)
    # Deterministic "nn.Linear"-like init (uniform in +-1/sqrt(hidden_size)).
    bound = 1.0 / (hidden_size ** 0.5)
    weight = jax.random.uniform(k_w, (F, hidden_size), jnp.float32, -bound, bound)
    bias = jax.random.uniform(k_b, (F,), jnp.float32, -bound, bound)

    # Pure-JAX reference (full f32), matching the PyTorch module exactly.
    ref = jnp.einsum("bth,fh->btf", x, weight,
                     precision=jax.lax.Precision.HIGHEST) + bias
    ref = jax.nn.sigmoid(ref)
    ref = ref.reshape(n_batch, n_frames, n_bins, n_channels)
    ref = jnp.transpose(ref, (0, 3, 2, 1))          # (B, C, n_bins, T)

    # f32 compute path (tile_t=128 -> exercises the tiled frame axis).
    out_f32 = mask_forward(x, weight, bias, n_bins, n_channels,
                           tile_t=128, compute_dtype=jnp.float32)
    out_f32 = jax.block_until_ready(out_f32)
    assert out_f32.shape == (n_batch, n_channels, n_bins, n_frames)
    assert jnp.allclose(out_f32, ref, atol=2e-3, rtol=0)

    # Default bf16 compute path (memory-bound fast path).
    out_bf16 = mask_forward(x, weight, bias, n_bins, n_channels, tile_t=128)
    out_bf16 = jax.block_until_ready(out_bf16)
    assert out_bf16.shape == (n_batch, n_channels, n_bins, n_frames)
    assert jnp.allclose(out_bf16, ref, atol=5e-3, rtol=0)

    print("KERNEL_OK")
</pallas_src>

<mosaic_0001>
module attributes {stable_mosaic.version = 11 : i64} {
  func.func @_mask_kernel(%arg0: i32, %arg1: i32, %arg2: i32, %arg3: memref<32x32xf32, #tpu.memory_space<vmem>>, %arg4: memref<32x1xf32, #tpu.memory_space<vmem>>, %arg5: memref<1x128x32xf32, #tpu.memory_space<vmem>>, %arg6: memref<1x32x128xf32, #tpu.memory_space<vmem>>) attributes {dimension_semantics = [#tpu.dimension_semantics<parallel>, #tpu.dimension_semantics<parallel>, #tpu.dimension_semantics<parallel>], iteration_bounds = array<i64: 2, 1, 2>, scalar_prefetch = 0 : i64, scratch_operands = 0 : i64, tpu.core_type = #tpu.core_type<tc>, window_params = [{transform_indices = @transform_0, window_bounds = array<i64: 32, 32>}, {transform_indices = @transform_1, window_bounds = array<i64: 32, 1>}, {transform_indices = @transform_2, window_bounds = array<i64: 1, 128, 32>}, {transform_indices = @transform_3, window_bounds = array<i64: 1, 32, 128>}]} {
    %c0 = arith.constant 0 : index
    %c0_0 = arith.constant 0 : index
    %0 = vector.load %arg3[%c0, %c0_0] : memref<32x32xf32, #tpu.memory_space<vmem>>, vector<32x32xf32>
    %c0_1 = arith.constant 0 : index
    %c0_2 = arith.constant 0 : index
    %c0_3 = arith.constant 0 : index
    %1 = vector.load %arg5[%c0_1, %c0_2, %c0_3] : memref<1x128x32xf32, #tpu.memory_space<vmem>>, vector<1x128x32xf32>
    %2 = vector.shape_cast %1 : vector<1x128x32xf32> to vector<128x32xf32>
    %cst = arith.constant dense<0.000000e+00> : vector<32x128xf32>
    %3 = tpu.matmul %0, %2, %cst {dimension_numbers = #tpu.dot_dimension_numbers<[1], [1], [0], [0], [0, 0, 1, 0], [], []>} : vector<32x32xf32>, vector<128x32xf32>, vector<32x128xf32> -> vector<32x128xf32>
    %c0_4 = arith.constant 0 : index
    %c0_5 = arith.constant 0 : index
    %4 = vector.load %arg4[%c0_4, %c0_5] : memref<32x1xf32, #tpu.memory_space<vmem>>, vector<32x1xf32>
    %5 = vector.broadcast %4 : vector<32x1xf32> to vector<32x128xf32>
    %6 = arith.addf %3, %5 : vector<32x128xf32>
    %7 = arith.negf %6 : vector<32x128xf32>
    %8 = math.exp %7 : vector<32x128xf32>
    %cst_6 = arith.constant 1.000000e+00 : f32
    %9 = vector.broadcast %cst_6 : f32 to vector<32x128xf32>
    %10 = arith.addf %9, %8 : vector<32x128xf32>
    %11 = arith.divf %9, %10 : vector<32x128xf32>
    %c0_7 = arith.constant 0 : index
    %c0_8 = arith.constant 0 : index
    %c0_9 = arith.constant 0 : index
    %12 = vector.load %arg6[%c0_7, %c0_8, %c0_9] : memref<1x32x128xf32, #tpu.memory_space<vmem>>, vector<1x32x128xf32>
    %13 = vector.shape_cast %12 : vector<1x32x128xf32> to vector<32x128xf32>
    %14 = vector.shape_cast %11 : vector<32x128xf32> to vector<1x32x128xf32>
    tpu.vector_store %arg6[%c0_7, %c0_8, %c0_9], %14 {strides = array<i32>} : memref<1x32x128xf32, #tpu.memory_space<vmem>>, vector<1x32x128xf32>,
    return
  }
  func.func @transform_0(%arg0: i32, %arg1: i32, %arg2: i32) -> (i32, i32) {
    %c0_i32 = arith.constant 0 : i32
    %c0_i32_0 = arith.constant 0 : i32
    return %arg1, %c0_i32 : i32, i32
  }
  func.func @transform_1(%arg0: i32, %arg1: i32, %arg2: i32) -> (i32, i32) {
    %c0_i32 = arith.constant 0 : i32
    %c0_i32_0 = arith.constant 0 : i32
    return %arg1, %c0_i32 : i32, i32
  }
  func.func @transform_2(%arg0: i32, %arg1: i32, %arg2: i32) -> (i32, i32, i32) {
    %c0_i32 = arith.constant 0 : i32
    %c0_i32_0 = arith.constant 0 : i32
    return %arg0, %arg2, %c0_i32 : i32, i32, i32
  }
  func.func @transform_3(%arg0: i32, %arg1: i32, %arg2: i32) -> (i32, i32, i32) {
    %c0_i32 = arith.constant 0 : i32
    return %arg0, %arg1, %arg2 : i32, i32, i32
  }
}

</mosaic_0001>

<llo_original>
// kernel: tpu_custom_call.1
$region0: #{tpu_custom_call.1}
  #allocation0 [shape = 'u32[]', space=smem, size = 0x4, offset = 0x4, fixed_abs, tag = 'smem constant byte address 0x4 - core index']
  #allocation1 [shape = 'u32[72,128]{1,0:T(1,128)}', space=vmem, size = 0x9000, scoped, tag = 'internal scratch']
  %s0 = inlined_call_operand.vmem [shape: f32[32,32], index: 0, kind: input, shape index: {}]
  %s1 = inlined_call_operand.vmem [shape: f32[32,1], index: 1, kind: input, shape index: {}]
  %s2 = inlined_call_operand.vmem [shape: f32[2,256,32], index: 2, kind: input, shape index: {}]
  %s3 = inlined_call_operand.hbm [shape: f32[2,32,256], index: 3, kind: output, shape index: {}]
  %s4 = sld [smem:[#allocation0]]
  $region45: #{tpu_custom_call.1} parent=0
    _
  %s6 = ssub.s32 1, %s4
  %s7 = scalar_select 0, %s6, %s4
  $region1: #{tpu_custom_call.1} parent=0
    #allocation2 [shape = 'u8[32768]{0}', space=vmem, size = 0x8000, scoped, tag = 'output window, operand 0']
    #allocation3 [shape = 's32[2]{0}', space=sflag, size = 0x8, scoped, tag = 'scoped memory for tpu_custom_call.1']
    %8 = vsyncpa [#allocation3], 0
    %s9 = scalar_lea.sflag [#allocation3], 1
    %10 = vsyncpa %s9, 0
    loop: start=0, step=1, limit=6
    $region2: #{tpu_custom_call.1} parent=1 // loop_pre_header
      _
    $region3: #{tpu_custom_call.1} parent=1 // loop_header
      %s12 = sphi 0, %s16
      %p13 = scmp.ge.s32.totalorder %s12, 6
      %s19 = sphi 0, %s38
      %s20 = sphi 0, %s34
      %s21 = sphi 0, %s30
      %s22 = sphi 0, %s19
      %s23 = sphi 0, %s20
      %s24 = sphi 0, %s21
      %s25 = sphi 0, %s22
      %s26 = sphi 0, %s23
      %s27 = sphi 0, %s24
      %s41 = sphi 0, %s43
      %s44 = sphi 0, %s41
      %s45 = sphi 0, %s44
      %s61 = sphi 0, %s45
      %s67 = sphi 0, %s69
      %s70 = sphi 0, %s67
      %s71 = sphi 0, %s70
      %s87 = sphi 0, %s71
      %s95 = sphi 0, %s97
      %s98 = sphi 0, %s95
      %s99 = sphi 0, %s98
      %s115 = sphi 0, %s99
      %s125 = sphi 0, %s127
      %s128 = sphi 0, %s125
      %s129 = sphi 0, %s128
      %s145 = sphi 0, %s129
    $region4: #{tpu_custom_call.1} parent=1 // loop_header_branch
      %15 = sbr.rel (%p13) target = $region8
    $region5: #{tpu_custom_call.1} parent=1 // loop_body
      %s17 = ssub.s32 %s12, 1
      %s18 = ssub.s32 %s12, 2
      %s28 = sadd.s32 1, %s21
      %p29 = scmp.ge.s32.totalorder %s28, 2
      %s30 = scalar_select %p29, 0, %s28
      %s31 = sadd.s32 1, %s20
      %s32 = scalar_select %p29, %s31, %s20
      %p33 = scmp.ge.s32.totalorder %s32, 1
      %s34 = scalar_select %p33, 0, %s32
      %s35 = sadd.s32 1, %s19
      %s36 = scalar_select %p33, %s35, %s19
      %p37 = scmp.ge.s32.totalorder %s36, 2
      %s38 = scalar_select %p37, 0, %s36
      %s39 = ssub.s32 %s20, %s34
      %p40 = scmp.eq.s32.totalorder %s39, 0
      %s42 = sadd.s32 %s41, 1
      %s43 = scalar_select %p40, %s41, %s42
      %p46 = pneg %p40
      %p47 = scmp.eq.s32.totalorder %s12, 3
      %p48 = por %p46, %p47
      %p49 = scmp.ne.s32.totalorder %s41, %s44
      %p50 = scmp.eq.s32.totalorder %s12, 0
      %p51 = por %p49, %p50
      %p52 = scmp.ne.s32.totalorder %s41, %s44
      %p53 = scmp.eq.s32.totalorder %s17, 3
      %p54 = por %p52, %p53
      %p55 = scmp.ne.s32.totalorder %s44, %s45
      %p56 = scmp.eq.s32.totalorder %s17, 0
      %p57 = por %p55, %p56
      %p58 = scmp.ne.s32.totalorder %s44, %s45
      %p59 = scmp.eq.s32.totalorder %s18, 3
      %p60 = por %p58, %p59
      %p62 = scmp.ne.s32.totalorder %s45, %s61
      %p63 = scmp.eq.s32.totalorder %s18, 0
      %p64 = por %p62, %p63
      %s65 = ssub.s32 %s20, %s34
      %p66 = scmp.eq.s32.totalorder %s65, 0
      %s68 = sadd.s32 %s67, 1
      %s69 = scalar_select %p66, %s67, %s68
      %p72 = pneg %p66
      %p73 = scmp.eq.s32.totalorder %s12, 3
      %p74 = por %p72, %p73
      %p75 = scmp.ne.s32.totalorder %s67, %s70
      %p76 = scmp.eq.s32.totalorder %s12, 0
      %p77 = por %p75, %p76
      %p78 = scmp.ne.s32.totalorder %s67, %s70
      %p79 = scmp.eq.s32.totalorder %s17, 3
      %p80 = por %p78, %p79
      %p81 = scmp.ne.s32.totalorder %s70, %s71
      %p82 = scmp.eq.s32.totalorder %s17, 0
      %p83 = por %p81, %p82
      %p84 = scmp.ne.s32.totalorder %s70, %s71
      %p85 = scmp.eq.s32.totalorder %s18, 3
      %p86 = por %p84, %p85
      %p88 = scmp.ne.s32.totalorder %s71, %s87
      %p89 = scmp.eq.s32.totalorder %s18, 0
      %p90 = por %p88, %p89
      %s91 = ssub.s32 %s19, %s38
      %s92 = ssub.s32 %s21, %s30
      %s93 = sor.u32 %s91, %s92
      %p94 = scmp.eq.s32.totalorder %s93, 0
      %s96 = sadd.s32 %s95, 1
      %s97 = scalar_select %p94, %s95, %s96
      %p100 = pneg %p94
      %p101 = scmp.eq.s32.totalorder %s12, 3
      %p102 = por %p100, %p101
      %p103 = scmp.ne.s32.totalorder %s95, %s98
      %p104 = scmp.eq.s32.totalorder %s12, 0
      %p105 = por %p103, %p104
      %p106 = scmp.ne.s32.totalorder %s95, %s98
      %p107 = scmp.eq.s32.totalorder %s17, 3
      %p108 = por %p106, %p107
      %p109 = scmp.ne.s32.totalorder %s98, %s99
      %p110 = scmp.eq.s32.totalorder %s17, 0
      %p111 = por %p109, %p110
      %p112 = scmp.ne.s32.totalorder %s98, %s99
      %p113 = scmp.eq.s32.totalorder %s18, 3
      %p114 = por %p112, %p113
      %p116 = scmp.ne.s32.totalorder %s99, %s115
      %p117 = scmp.eq.s32.totalorder %s18, 0
      %p118 = por %p116, %p117
      %s119 = ssub.s32 %s19, %s38
      %s120 = ssub.s32 %s20, %s34
      %s121 = sor.u32 %s119, %s120
      %s122 = ssub.s32 %s21, %s30
      %s123 = sor.u32 %s121, %s122
      %p124 = scmp.eq.s32.totalorder %s123, 0
      %s126 = sadd.s32 %s125, 1
      %s127 = scalar_select %p124, %s125, %s126
      %p130 = pneg %p124
      %p131 = scmp.eq.s32.totalorder %s12, 3
      %p132 = por %p130, %p131
      %p133 = scmp.ne.s32.totalorder %s125, %s128
      %p134 = scmp.eq.s32.totalorder %s12, 0
      %p135 = por %p133, %p134
      %p136 = scmp.ne.s32.totalorder %s125, %s128
      %p137 = scmp.eq.s32.totalorder %s17, 3
      %p138 = por %p136, %p137
      %p139 = scmp.ne.s32.totalorder %s128, %s129
      %p140 = scmp.eq.s32.totalorder %s17, 0
      %p141 = por %p139, %p140
      %p142 = scmp.ne.s32.totalorder %s128, %s129
      %p143 = scmp.eq.s32.totalorder %s18, 3
      %p144 = por %p142, %p143
      %p146 = scmp.ne.s32.totalorder %s129, %s145
      %p147 = scmp.eq.s32.totalorder %s18, 0
      %p148 = por %p146, %p147
      %p149 = scmp.le.s32.totalorder 1, %s12
      %p150 = scmp.lt.s32.totalorder %s12, 5
      %p151 = pnand %p149, %p150
      %p152 = pneg %p151
      // Predicated region
      $region9: #{tpu_custom_call.1} parent=5 // pred_check
        _
      $region10: #{tpu_custom_call.1} parent=5 // pred_check_branch
        %154 = sbr.rel (%p151) target = $region12
      $region11: #{tpu_custom_call.1} parent=5 // pred_region
        %s155 = ssub.s32 %s12, 1
        // Predicated region
        $region13: #{tpu_custom_call.1} parent=11 // pred_check
          %p156 = pneg %p57
        $region14: #{tpu_custom_call.1} parent=11 // pred_check_branch
          %158 = sbr.rel (%p156) target = $region16
        $region15: #{tpu_custom_call.1} parent=11 // pred_region
          %s159 = smul.u32 4, %s23
          %p160 = scmp.lt.s32.totalorder %s159, 3
          %s161 = scalar_select %p160, %s159, 3
          %s162 = smul.addr %s161, 8
          %s163 = scalar_lea.vmem %s0, %s162
          %s164 = smul.u32 4, %s23
        $region16: #{tpu_custom_call.1} parent=11 // pred_fallthru
          _
        // Predicated region
        $region17: #{tpu_custom_call.1} parent=11 // pred_check
          %p165 = pneg %p83
        $region18: #{tpu_custom_call.1} parent=11 // pred_check_branch
          %167 = sbr.rel (%p165) target = $region20
        $region19: #{tpu_custom_call.1} parent=11 // pred_region
          %s168 = smul.u32 4, %s23
          %p169 = scmp.lt.s32.totalorder %s168, 3
          %s170 = scalar_select %p169, %s168, 3
          %s171 = smul.addr %s170, 8
          %s172 = scalar_lea.vmem %s1, %s171
          %s173 = smul.u32 4, %s23
        $region20: #{tpu_custom_call.1} parent=11 // pred_fallthru
          _
      $region12: #{tpu_custom_call.1} parent=5 // pred_fallthru
        _
      %p174 = scmp.lt.s32.totalorder %s12, 4
      // Predicated region
      $region21: #{tpu_custom_call.1} parent=5 // pred_check
        %p175 = pneg %p174
      $region22: #{tpu_custom_call.1} parent=5 // pred_check_branch
        %177 = sbr.rel (%p175) target = $region24
      $region23: #{tpu_custom_call.1} parent=5 // pred_region
        // Predicated region
        $region25: #{tpu_custom_call.1} parent=23 // pred_check
          %p178 = pneg %p105
        $region26: #{tpu_custom_call.1} parent=23 // pred_check_branch
          %180 = sbr.rel (%p178) target = $region28
        $region27: #{tpu_custom_call.1} parent=23 // pred_region
          %s181 = smul.u32 16, %s21
          %p182 = scmp.lt.s32.totalorder %s19, 1
          %s183 = scalar_select %p182, %s19, 1
          %p184 = scmp.lt.s32.totalorder %s181, 31
          %s185 = scalar_select %p184, %s181, 31
          %s186 = smul.addr %s183, 32
          %s187 = sadd.s32 %s185, %s186
          %s188 = smul.addr %s187, 8
          %s189 = scalar_lea.vmem %s2, %s188
          %s190 = smul.u32 16, %s21
        $region28: #{tpu_custom_call.1} parent=23 // pred_fallthru
          _
      $region24: #{tpu_custom_call.1} parent=5 // pred_fallthru
        _
      %p191 = scmp.le.s32.totalorder 1, %s12
      %p192 = scmp.lt.s32.totalorder %s12, 5
      %p193 = pnand %p191, %p192
      %p194 = pneg %p193
      // Predicated region
      $region29: #{tpu_custom_call.1} parent=5 // pred_check
        _
      $region30: #{tpu_custom_call.1} parent=5 // pred_check_branch
        %196 = sbr.rel (%p193) target = $region32
      $region31: #{tpu_custom_call.1} parent=5 // pred_region
        %s197 = ssub.s32 %s12, 1
        %s198 = smul.u32 4, %s23
        %p199 = scmp.lt.s32.totalorder %s198, 3
        %s200 = scalar_select %p199, %s198, 3
        %s201 = smul.addr %s200, 8
        %s202 = scalar_lea.vmem %s0, %s201
        %p203 = pneg %p57
        %p204 = pneg %p54
        %s205 = smul.u32 4, %s23
        %p206 = scmp.lt.s32.totalorder %s205, 3
        %s207 = scalar_select %p206, %s205, 3
        %s208 = smul.addr %s207, 8
        %s209 = scalar_lea.vmem %s1, %s208
        %p210 = pneg %p83
        %p211 = pneg %p80
        %s212 = smul.u32 16, %s24
        %p213 = scmp.lt.s32.totalorder %s22, 1
        %s214 = scalar_select %p213, %s22, 1
        %p215 = scmp.lt.s32.totalorder %s212, 31
        %s216 = scalar_select %p215, %s212, 31
        %s217 = smul.addr %s214, 32
        %s218 = sadd.s32 %s216, %s217
        %s219 = smul.addr %s218, 8
        %s220 = scalar_lea.vmem %s2, %s219
        %p221 = pneg %p111
        %p222 = pneg %p108
        %p223 = pneg %p141
        %p224 = pneg %p138
        %s225 = sand.u32 %s128, 1
        %s226 = scalar_lea.sflag [#allocation3], %s225
        %s227 = sand.u32 %s128, 1
        %s228 = smul.addr %s227, 32
        %s229 = scalar_lea.vmem [#allocation2], %s228
        %s230 = smul.u32 4, %s23
        %p231 = scmp.lt.s32.totalorder %s230, 3
        %s232 = scalar_select %p231, %s230, 3
        %s233 = smul.addr %s232, 8
        %s234 = scalar_lea.vmem %s0, %s233
        %s235 = smul.u32 4, %s23
        %s236 = smul.u32 4, %s23
        %p237 = scmp.lt.s32.totalorder %s236, 3
        %s238 = scalar_select %p237, %s236, 3
        %s239 = smul.addr %s238, 8
        %s240 = scalar_lea.vmem %s1, %s239
        %s241 = smul.u32 4, %s23
        %s242 = smul.u32 16, %s24
        %p243 = scmp.lt.s32.totalorder %s22, 1
        %s244 = scalar_select %p243, %s22, 1
        %p245 = scmp.lt.s32.totalorder %s242, 31
        %s246 = scalar_select %p245, %s242, 31
        %s247 = smul.addr %s244, 32
        %s248 = sadd.s32 %s246, %s247
        %s249 = smul.addr %s248, 8
        %s250 = scalar_lea.vmem %s2, %s249
        %s251 = smul.u32 16, %s24
        %s252 = smul.u32 4, %s23
        %v253 = vld [vmem:[%s234] sm:$0xff]
        %v254 = vld [vmem:[%s234 + $0x8] sm:$0xff]
        %v255 = vld [vmem:[%s234 + $0x10] sm:$0xff]
        %v256 = vld [vmem:[%s234 + $0x18] sm:$0xff]
        %v257 = vld [vmem:[%s250] sm:$0xff]
        %v258 = vld [vmem:[%s250 + $0x8] sm:$0xff]
        %v259 = vld [vmem:[%s250 + $0x10] sm:$0xff]
        %v260 = vld [vmem:[%s250 + $0x18] sm:$0xff]
        %v261 = vld [vmem:[%s250 + $0x20] sm:$0xff]
        %v262 = vld [vmem:[%s250 + $0x28] sm:$0xff]
        %v263 = vld [vmem:[%s250 + $0x30] sm:$0xff]
        %v264 = vld [vmem:[%s250 + $0x38] sm:$0xff]
        %v265 = vld [vmem:[%s250 + $0x40] sm:$0xff]
        %v266 = vld [vmem:[%s250 + $0x48] sm:$0xff]
        %v267 = vld [vmem:[%s250 + $0x50] sm:$0xff]
        %v268 = vld [vmem:[%s250 + $0x58] sm:$0xff]
        %v269 = vld [vmem:[%s250 + $0x60] sm:$0xff]
        %v270 = vld [vmem:[%s250 + $0x68] sm:$0xff]
        %v271 = vld [vmem:[%s250 + $0x70] sm:$0xff]
        %v272 = vld [vmem:[%s250 + $0x78] sm:$0xff]
        %v273 = vld [vmem:[%s240] sm:$0xff]
        %v274 = vld [vmem:[%s240 + $0x8] sm:$0xff]
        %v275 = vld [vmem:[%s240 + $0x10] sm:$0xff]
        %v276 = vld [vmem:[%s240 + $0x18] sm:$0xff]
        %278 = vset.pattern.permute.xlu0 0
        %279 = vperm.xlu0 %278, %v273
        %v280 = vpop.permute.xlu0 %279
        %283 = vset.pattern.permute.xlu0 0
        %284 = vperm.xlu0 %283, %v274
        %v285 = vpop.permute.xlu0 %284
        %288 = vset.pattern.permute.xlu0 0
        %289 = vperm.xlu0 %288, %v275
        %v290 = vpop.permute.xlu0 %289
        %293 = vset.pattern.permute.xlu0 0
        %294 = vperm.xlu0 %293, %v276
        %v295 = vpop.permute.xlu0 %294
        %vm297 = vcmask 261120
        %v299 = vsel %vm297, %v253, 0
        %v302 = vsel %vm297, %v254, 0
        %v305 = vsel %vm297, %v255, 0
        %v308 = vsel %vm297, %v256, 0
        %v311 = vsel %vm297, %v257, 0
        %v314 = vsel %vm297, %v258, 0
        %v317 = vsel %vm297, %v259, 0
        %v320 = vsel %vm297, %v260, 0
        %v323 = vsel %vm297, %v261, 0
        %v326 = vsel %vm297, %v262, 0
        %v329 = vsel %vm297, %v263, 0
        %v332 = vsel %vm297, %v264, 0
        %v335 = vsel %vm297, %v265, 0
        %v338 = vsel %vm297, %v266, 0
        %v341 = vsel %vm297, %v267, 0
        %v344 = vsel %vm297, %v268, 0
        %v347 = vsel %vm297, %v269, 0
        %v350 = vsel %vm297, %v270, 0
        %v353 = vsel %vm297, %v271, 0
        %v356 = vsel %vm297, %v272, 0
        %358 = vmatpush.xpose.msra.mxu0 %v356
        %359 = vmatpush.xpose.msra.mxu0 %v353
        %360 = vmatpush.xpose.msra.mxu0 %v350
        %361 = vmatpush.xpose.msra.mxu0 %v347
        %362 = vmatpush.xpose.msra.mxu0 %v344
        %363 = vmatpush.xpose.msra.mxu0 %v341
        %364 = vmatpush.xpose.msra.mxu0 %v338
        %365 = vmatpush.xpose.msra.mxu0 %v335
        %366 = vmatpush.xpose.msra.mxu0 %v332
        %367 = vmatpush.xpose.msra.mxu0 %v329
        %368 = vmatpush.xpose.msra.mxu0 %v326
        %369 = vmatpush.xpose.msra.mxu0 %v323
        %370 = vmatpush.xpose.msra.mxu0 %v320
        %371 = vmatpush.xpose.msra.mxu0 %v317
        %372 = vmatpush.xpose.msra.mxu0 %v314
        %373 = vmatpush.xpose.msra.mxu0 %v311
        %374 = vmatmul.f32.gmra.mxu0 %v299
        %v375 = vpop.f32.mrf.mxu0
        %v376 = vadd.f32 %v280, %v375
        %377 = vmatmul.f32.gmra.mxu0 %v302
        %v378 = vpop.f32.mrf.mxu0
        %v379 = vadd.f32 %v285, %v378
        %380 = vmatmul.f32.gmra.mxu0 %v305
        %v381 = vpop.f32.mrf.mxu0
        %v382 = vadd.f32 %v290, %v381
        %383 = vmatmul.f32.gmra.mxu0 %v308
        %v384 = vpop.f32.mrf.mxu0
        %v385 = vadd.f32 %v295, %v384
        %386 = vdwg.mxu0
        %v387 = vxor.u32 %v376, 2147483648
        %v388 = vxor.u32 %v379, 2147483648
        %v389 = vxor.u32 %v382, 2147483648
        %v390 = vxor.u32 %v385, 2147483648
        %v391 = vmul.f32 %v387, 1.442695
        %v392 = vpow.pop %v391
        %v393 = vmul.f32 %v388, 1.442695
        %v394 = vpow.pop %v393
        %v395 = vmul.f32 %v389, 1.442695
        %v396 = vpow.pop %v395
        %v397 = vmul.f32 %v390, 1.442695
        %v398 = vpow.pop %v397
        %v399 = vadd.f32 %v392, 1.0
        %v400 = vadd.f32 %v394, 1.0
        %v401 = vadd.f32 %v396, 1.0
        %v402 = vadd.f32 %v398, 1.0
        %v403 = vrcp.pop %v399
        %v404 = vmul.f32 %v399, %v403
        %v405 = vsub.f32 1.0, %v404
        %v406 = vmul.f32 %v403, %v405
        %v407 = vadd.f32 %v403, %v406
        %vm408 = vweird.f32 %v399
        %vm409 = vweird.f32 %v403
        %vm410 = vmor %vm408, %vm409
        %v411 = vsel %vm410, %v403, %v407
        %v412 = vand.u32 2147483647, %v399
        %vm413 = vcmp.eq.f32.partialorder %v412, 8.507059e+37
        %v414 = vand.u32 %v399, 2147483648
        %v415 = vor.u32 1.1754944e-38, %v414
        %v416 = vsel %vm413, %v415, %v411
        %v417 = vmul.f32 1.0, %v416
        %v418 = vrcp.pop %v400
        %v419 = vmul.f32 %v400, %v418
        %v420 = vsub.f32 1.0, %v419
        %v421 = vmul.f32 %v418, %v420
        %v422 = vadd.f32 %v418, %v421
        %vm423 = vweird.f32 %v400
        %vm424 = vweird.f32 %v418
        %vm425 = vmor %vm423, %vm424
        %v426 = vsel %vm425, %v418, %v422
        %v427 = vand.u32 2147483647, %v400
        %vm428 = vcmp.eq.f32.partialorder %v427, 8.507059e+37
        %v429 = vand.u32 %v400, 2147483648
        %v430 = vor.u32 1.1754944e-38, %v429
        %v431 = vsel %vm428, %v430, %v426
        %v432 = vmul.f32 1.0, %v431
        %v433 = vrcp.pop %v401
        %v434 = vmul.f32 %v401, %v433
        %v435 = vsub.f32 1.0, %v434
        %v436 = vmul.f32 %v433, %v435
        %v437 = vadd.f32 %v433, %v436
        %vm438 = vweird.f32 %v401
        %vm439 = vweird.f32 %v433
        %vm440 = vmor %vm438, %vm439
        %v441 = vsel %vm440, %v433, %v437
        %v442 = vand.u32 2147483647, %v401
        %vm443 = vcmp.eq.f32.partialorder %v442, 8.507059e+37
        %v444 = vand.u32 %v401, 2147483648
        %v445 = vor.u32 1.1754944e-38, %v444
        %v446 = vsel %vm443, %v445, %v441
        %v447 = vmul.f32 1.0, %v446
        %v448 = vrcp.pop %v402
        %v449 = vmul.f32 %v402, %v448
        %v450 = vsub.f32 1.0, %v449
        %v451 = vmul.f32 %v448, %v450
        %v452 = vadd.f32 %v448, %v451
        %vm453 = vweird.f32 %v402
        %vm454 = vweird.f32 %v448
        %vm455 = vmor %vm453, %vm454
        %v456 = vsel %vm455, %v448, %v452
        %v457 = vand.u32 2147483647, %v402
        %vm458 = vcmp.eq.f32.partialorder %v457, 8.507059e+37
        %v459 = vand.u32 %v402, 2147483648
        %v460 = vor.u32 1.1754944e-38, %v459
        %v461 = vsel %vm458, %v460, %v456
        %v462 = vmul.f32 1.0, %v461
        %463 = vst [vmem:[%s229] sm:$0xff] %v417
        %464 = vst [vmem:[%s229 + $0x8] sm:$0xff] %v432
        %465 = vst [vmem:[%s229 + $0x10] sm:$0xff] %v447
        %466 = vst [vmem:[%s229 + $0x18] sm:$0xff] %v462
        %s467 = sand.u32 %s128, 1
        %s468 = scalar_lea.sflag [#allocation3], %s467
        %s469 = sand.u32 %s128, 1
        %s470 = smul.addr %s469, 32
        %s471 = scalar_lea.vmem [#allocation2], %s470
        // Predicated region
        $region33: #{tpu_custom_call.1} parent=31 // pred_check
          %p472 = pneg %p138
        $region34: #{tpu_custom_call.1} parent=31 // pred_check_branch
          %474 = sbr.rel (%p472) target = $region36
        $region35: #{tpu_custom_call.1} parent=31 // pred_region
          %s475 = smul.u32 4, %s23
          %477 = vsyncadd %s468, 0
          %s478 = smul.addr %s475, 2
          %s479 = sadd.s32 %s24, %s478
          %s480 = smul.addr %s22, 8
          %s481 = sadd.s32 %s479, %s480
          %s482 = smul.addr %s481, 8
          %s483 = scalar_lea.hbm %s3, %s482
          %s484 = sshll.u32 %s471, 4
          %s485 = int_to_ptr.vmem [resolvable:$true] %s484
          %s486 = sshll.u32 %s483, 4
          %s487 = int_to_ptr.hbm [resolvable:$true] %s486
          %492 = dma.vmem_to_hbm [thread:$0]  %s485, 512, %s487, %s468, 128, 256, 8
        $region36: #{tpu_custom_call.1} parent=31 // pred_fallthru
          _
      $region32: #{tpu_custom_call.1} parent=5 // pred_fallthru
        _
      %p493 = scmp.le.s32.totalorder 2, %s12
      // Predicated region
      $region37: #{tpu_custom_call.1} parent=5 // pred_check
        %p494 = pneg %p493
      $region38: #{tpu_custom_call.1} parent=5 // pred_check_branch
        %496 = sbr.rel (%p494) target = $region40
      $region39: #{tpu_custom_call.1} parent=5 // pred_region
        %s497 = ssub.s32 %s12, 2
        // Predicated region
        $region41: #{tpu_custom_call.1} parent=39 // pred_check
          %p498 = pneg %p144
        $region42: #{tpu_custom_call.1} parent=39 // pred_check_branch
          %500 = sbr.rel (%p498) target = $region44
        $region43: #{tpu_custom_call.1} parent=39 // pred_region
          %s501 = sand.u32 %s129, 1
          %s502 = scalar_lea.sflag [#allocation3], %s501
          %s503 = sand.u32 %s129, 1
          %s504 = smul.addr %s503, 32
          %s505 = scalar_lea.vmem [#allocation2], %s504
          %507 = dma.done %s502, 512
        $region44: #{tpu_custom_call.1} parent=39 // pred_fallthru
          _
      $region40: #{tpu_custom_call.1} parent=5 // pred_fallthru
        _
    $region6: #{tpu_custom_call.1} parent=1 // loop_footer
      %s16 = sadd.s32 1, %s12
    $region7: #{tpu_custom_call.1} parent=1 // loop_footer_branch
      %11 = sbr.rel target = $region3
    $region8: #{tpu_custom_call.1} parent=1 // loop_exit
      _
    %508 = vsyncpa [#allocation3], 1
    %s509 = scalar_lea.sflag [#allocation3], 1
    %510 = vsyncpa %s509, 1

</llo_original>
